<compile_context>
chip_gen: v6e
topology: v6e:2x2x1
jax: 0.10.0
libtpu: 0.0.40
codegen_flags: <defaults>
</compile_context>

<pallas_src>
import jax
import jax.numpy as jnp
from jax.experimental import pallas as pl
from jax.experimental.pallas import tpu as pltpu


def _round_up(n, m):
    return ((n + m - 1) // m) * m


def _generate_from_normal_kernel(x_ref, w_ref, b_ref, err_ref, out_ref):
    # x_ref   : (TILE_B, H)   activation tile (f32 or bf16)
    # w_ref   : (H, 2)        fused weights [w_mu | w_sigma], same dtype as x
    # b_ref   : (1, 2)  f32   SMEM: [b_mu, b_sigma]
    # err_ref : (TILE_B, 1)   f32 N(0, 1) noise tile
    # out_ref : (TILE_B, 2)   f32: col 0 = y_hat, col 1 = sigma
    x = x_ref[...]

    # One fused MXU matmul for both heads, f32 accumulation.
    r = jnp.dot(x, w_ref[...], preferred_element_type=jnp.float32)  # (TB, 2)

    mu = r[:, 0:1] + b_ref[0, 0]                                     # (TB, 1)
    z = r[:, 1:2] + b_ref[0, 1]                                      # (TB, 1)

    # Numerically stable softplus: max(z, 0) + log1p(exp(-|z|))  (f32 VPU/EUP)
    sigma = jnp.maximum(z, 0.0) + jnp.log1p(jnp.exp(-jnp.abs(z)))
    y_hat = mu + sigma * err_ref[...]

    # Pack [y_hat | sigma] into one (TB, 2) store (no concat / transpose needed).
    col = jax.lax.broadcasted_iota(jnp.int32, r.shape, 1)
    out_ref[...] = jnp.where(col == 0, y_hat, sigma).astype(out_ref.dtype)


def _choose_tile_b(batch, hidden, itemsize):
    # Target ~4 MiB of x per tile (double-buffered -> ~8 MiB), well inside the
    # scoped VMEM limit on v5e (16 MiB) / v6e / v7x (32 MiB scoped, 64 MiB phys).
    budget = 4 * 1024 * 1024
    tile = budget // max(1, hidden * itemsize)
    tile = max(8, (tile // 8) * 8)
    tile = min(tile, 4096)
    if batch <= tile:                      # small batch: one tile covers it
        tile = max(8, _round_up(batch, 8))
    return tile


def generate_from_normal(x, w_mu, b_mu, w_sigma, b_sigma, noise_key):
    """Pallas implementation of GenerateFromNormal.forward.

    x        : (batch, 1, hidden)   f32 or bf16
    w_mu     : (hidden, 1), b_mu: (1,)
    w_sigma  : (hidden, 1), b_sigma: (1,)
    returns  : (y_hat, sigma), each shape (batch,), float32
    """
    x2d = jnp.squeeze(x, axis=1)                    # (B, H); keep input dtype
    B, H = x2d.shape
    dtype = x2d.dtype
    itemsize = jnp.dtype(dtype).itemsize

    # Deterministic stand-in for torch.normal(mean=0, std=1, size=(B, 1)).
    err = jax.random.normal(noise_key, (B, 1), dtype=jnp.float32)

    # Fuse the two heads: (H, 2) weight, (1, 2) bias.
    w_both = jnp.concatenate(
        [w_mu.reshape(H, 1), w_sigma.reshape(H, 1)], axis=1).astype(dtype)
    b_both = jnp.stack(
        [b_mu.reshape(()), b_sigma.reshape(())]).reshape(1, 2).astype(jnp.float32)

    tile_b = _choose_tile_b(B, H, itemsize)
    b_pad = _round_up(B, tile_b)
    if b_pad != B:
        x2d = jnp.pad(x2d, ((0, b_pad - B), (0, 0)))
        err = jnp.pad(err, ((0, b_pad - B), (0, 0)))

    grid = (b_pad // tile_b,)

    out = pl.pallas_call(
        _generate_from_normal_kernel,
        out_shape=jax.ShapeDtypeStruct((b_pad, 2), jnp.float32),
        grid=grid,
        in_specs=[
            pl.BlockSpec((tile_b, H), lambda i: (i, 0)),          # x: streamed tiles
            pl.BlockSpec((H, 2), lambda i: (0, 0)),               # weights: VMEM resident
            pl.BlockSpec(memory_space=pltpu.MemorySpace.SMEM),    # biases: SMEM scalars
            pl.BlockSpec((tile_b, 1), lambda i: (i, 0)),          # noise: streamed tiles
        ],
        out_specs=pl.BlockSpec((tile_b, 2), lambda i: (i, 0)),    # fused [y_hat | sigma]
        compiler_params=pltpu.CompilerParams(
            dimension_semantics=("parallel",),
        ),
    )(x2d, w_both, b_both, err)

    y_hat = out[:B, 0]
    sigma = out[:B, 1]
    return y_hat, sigma


def init_params(key, hidden_size):
    """Deterministic nn.Linear(hidden_size, 1)-style init for both heads."""
    k1, k2, k3, k4 = jax.random.split(key, 4)
    bound = 1.0 / jnp.sqrt(hidden_size)
    w_mu = jax.random.uniform(k1, (hidden_size, 1), jnp.float32, -bound, bound)
    b_mu = jax.random.uniform(k2, (1,), jnp.float32, -bound, bound)
    w_sigma = jax.random.uniform(k3, (hidden_size, 1), jnp.float32, -bound, bound)
    b_sigma = jax.random.uniform(k4, (1,), jnp.float32, -bound, bound)
    return w_mu, b_mu, w_sigma, b_sigma


if __name__ == "__main__":
    hidden_size = 32
    batch = 8

    root = jax.random.PRNGKey(0)
    k_param, k_x, k_noise = jax.random.split(root, 3)

    w_mu, b_mu, w_sigma, b_sigma = init_params(k_param, hidden_size)
    x = jax.random.normal(k_x, (batch, 1, hidden_size), dtype=jnp.float32)

    y_hat, sigma = generate_from_normal(x, w_mu, b_mu, w_sigma, b_sigma, k_noise)
    jax.block_until_ready((y_hat, sigma))

    # Pure-JAX reference (same noise key) for correctness.
    x2d = jnp.squeeze(x, axis=1)
    err = jax.random.normal(k_noise, (batch, 1), dtype=jnp.float32)
    mu_ref = x2d @ w_mu + b_mu
    sigma_ref = jax.nn.softplus(x2d @ w_sigma + b_sigma)
    yhat_ref = jnp.squeeze(mu_ref + sigma_ref * err, axis=1)
    sigma_ref = jnp.squeeze(sigma_ref, axis=1)

    assert y_hat.shape == (batch,) and sigma.shape == (batch,)
    assert jnp.allclose(y_hat, yhat_ref, atol=1e-5, rtol=1e-5)
    assert jnp.allclose(sigma, sigma_ref, atol=1e-5, rtol=1e-5)

    print("KERNEL_OK")
</pallas_src>

<mosaic_0001>
module attributes {stable_mosaic.version = 11 : i64} {
  func.func @_generate_from_normal_kernel(%arg0: i32, %arg1: memref<8x32xf32, #tpu.memory_space<vmem>>, %arg2: memref<32x2xf32, #tpu.memory_space<vmem>>, %arg3: memref<1x2xf32, #tpu.memory_space<smem>>, %arg4: memref<8x1xf32, #tpu.memory_space<vmem>>, %arg5: memref<8x2xf32, #tpu.memory_space<vmem>>) attributes {dimension_semantics = [#tpu.dimension_semantics<parallel>], iteration_bounds = array<i64: 1>, scalar_prefetch = 0 : i64, scratch_operands = 0 : i64, tpu.core_type = #tpu.core_type<tc>, window_params = [{transform_indices = @transform_0, window_bounds = array<i64: 8, 32>}, {pipeline_mode = #tpu.pipeline_mode<synchronous>, transform_indices = @transform_1, window_bounds = array<i64: 32, 2>}, {transform_indices = @transform_2, window_bounds = array<i64: 1, 2>}, {transform_indices = @transform_3, window_bounds = array<i64: 8, 1>}, {transform_indices = @transform_4, window_bounds = array<i64: 8, 2>}]} {
    %c0 = arith.constant 0 : index
    %c0_0 = arith.constant 0 : index
    %0 = vector.load %arg1[%c0, %c0_0] : memref<8x32xf32, #tpu.memory_space<vmem>>, vector<8x32xf32>
    %c0_1 = arith.constant 0 : index
    %c0_2 = arith.constant 0 : index
    %1 = vector.load %arg2[%c0_1, %c0_2] : memref<32x2xf32, #tpu.memory_space<vmem>>, vector<32x2xf32>
    %cst = arith.constant dense<0.000000e+00> : vector<8x2xf32>
    %2 = tpu.matmul %0, %1, %cst {dimension_numbers = #tpu.dot_dimension_numbers<[1], [0], [0], [1], [0, 0, 1, 1], [], []>} : vector<8x32xf32>, vector<32x2xf32>, vector<8x2xf32> -> vector<8x2xf32>
    %3 = vector.extract_strided_slice %2 {offsets = [0, 0], sizes = [8, 1], strides = [1, 1]} : vector<8x2xf32> to vector<8x1xf32>
    %c0_3 = arith.constant 0 : index
    %c0_4 = arith.constant 0 : index
    %4 = memref.load %arg3[%c0_3, %c0_4] : memref<1x2xf32, #tpu.memory_space<smem>>
    %5 = vector.broadcast %4 : f32 to vector<8x1xf32>
    %6 = arith.addf %3, %5 : vector<8x1xf32>
    %7 = vector.extract_strided_slice %2 {offsets = [0, 1], sizes = [8, 1], strides = [1, 1]} : vector<8x2xf32> to vector<8x1xf32>
    %c0_5 = arith.constant 0 : index
    %c1 = arith.constant 1 : index
    %8 = memref.load %arg3[%c0_5, %c1] : memref<1x2xf32, #tpu.memory_space<smem>>
    %9 = vector.broadcast %8 : f32 to vector<8x1xf32>
    %10 = arith.addf %7, %9 : vector<8x1xf32>
    %cst_6 = arith.constant 0.000000e+00 : f32
    %11 = vector.broadcast %cst_6 : f32 to vector<8x1xf32>
    %12 = arith.maximumf %10, %11 : vector<8x1xf32>
    %13 = math.absf %10 : vector<8x1xf32>
    %cst_7 = arith.constant 0.000000e+00 : f32
    %14 = vector.broadcast %cst_7 : f32 to vector<8x1xf32>
    %15 = arith.subf %14, %13 : vector<8x1xf32>
    %16 = math.exp %15 : vector<8x1xf32>
    %17 = math.log1p %16 : vector<8x1xf32>
    %18 = arith.addf %12, %17 : vector<8x1xf32>
    %c0_8 = arith.constant 0 : index
    %c0_9 = arith.constant 0 : index
    %19 = vector.load %arg4[%c0_8, %c0_9] : memref<8x1xf32, #tpu.memory_space<vmem>>, vector<8x1xf32>
    %20 = arith.mulf %18, %19 : vector<8x1xf32>
    %21 = arith.addf %6, %20 : vector<8x1xf32>
    %22 = tpu.iota {dimensions = array<i32: 1>} : vector<8x2xi32>
    %c0_i32 = arith.constant 0 : i32
    %23 = vector.broadcast %c0_i32 : i32 to vector<8x2xi32>
    %24 = arith.cmpi eq, %22, %23 : vector<8x2xi32>
    %25 = vector.shape_cast %21 : vector<8x1xf32> to vector<8x1xf32>
    %26 = vector.broadcast %25 : vector<8x1xf32> to vector<8x2xf32>
    %27 = vector.shape_cast %18 : vector<8x1xf32> to vector<8x1xf32>
    %28 = vector.broadcast %27 : vector<8x1xf32> to vector<8x2xf32>
    %29 = arith.select %24, %26, %28 : vector<8x2xi1>, vector<8x2xf32>
    %c0_10 = arith.constant 0 : index
    %c0_11 = arith.constant 0 : index
    %30 = vector.load %arg5[%c0_10, %c0_11] : memref<8x2xf32, #tpu.memory_space<vmem>>, vector<8x2xf32>
    tpu.vector_store %arg5[%c0_10, %c0_11], %29 {strides = array<i32>} : memref<8x2xf32, #tpu.memory_space<vmem>>, vector<8x2xf32>,
    return
  }
  func.func @transform_0(%arg0: i32) -> (i32, i32) {
    %c0_i32 = arith.constant 0 : i32
    %c0_i32_0 = arith.constant 0 : i32
    return %arg0, %c0_i32 : i32, i32
  }
  func.func @transform_1(%arg0: i32) -> (i32, i32) {
    %c0_i32 = arith.constant 0 : i32
    %c0_i32_0 = arith.constant 0 : i32
    %c0_i32_1 = arith.constant 0 : i32
    return %c0_i32, %c0_i32_0 : i32, i32
  }
  func.func @transform_2(%arg0: i32) -> (i32, i32) {
    %c0_i32 = arith.constant 0 : i32
    %c0_i32_0 = arith.constant 0 : i32
    %c0_i32_1 = arith.constant 0 : i32
    return %c0_i32, %c0_i32_0 : i32, i32
  }
  func.func @transform_3(%arg0: i32) -> (i32, i32) {
    %c0_i32 = arith.constant 0 : i32
    %c0_i32_0 = arith.constant 0 : i32
    return %arg0, %c0_i32 : i32, i32
  }
  func.func @transform_4(%arg0: i32) -> (i32, i32) {
    %c0_i32 = arith.constant 0 : i32
    %c0_i32_0 = arith.constant 0 : i32
    return %arg0, %c0_i32 : i32, i32
  }
}

</mosaic_0001>

<llo_original>
// kernel: tpu_custom_call.1
$region0: #{tpu_custom_call.1}
  #allocation0 [shape = 'u32[]', space=smem, size = 0x4, offset = 0x4, fixed_abs, tag = 'smem constant byte address 0x4 - core index']
  #allocation1 [shape = 'u32[144,128]{1,0:T(1,128)}', space=vmem, size = 0x12000, scoped, tag = 'internal scratch']
  %s0 = inlined_call_operand.vmem [shape: f32[8,32], index: 0, kind: input, shape index: {}]
  %s1 = inlined_call_operand.vmem [shape: f32[32,2], index: 1, kind: input, shape index: {}]
  %s2 = inlined_call_operand.vmem [shape: f32[1,2], index: 2, kind: input, shape index: {}]
  %s3 = inlined_call_operand.vmem [shape: f32[8,1], index: 3, kind: input, shape index: {}]
  %s4 = inlined_call_operand.vmem [shape: f32[8,2], index: 4, kind: output, shape index: {}]
  %s5 = sld [smem:[#allocation0]]
  $region30: #{tpu_custom_call.1} parent=0
    _
  %s7 = ssub.s32 1, %s5
  %s8 = scalar_select 0, %s7, %s5
  $region1: #{tpu_custom_call.1} parent=0
    #allocation2 [shape = 'u8[512]{0}', space=smem, size = 0x200, scoped, tag = 'input window, operand 2, single buffered']
    #allocation3 [shape = 's32[1]{0}', space=sflag, size = 0x4, scoped, tag = 'scoped memory for tpu_custom_call.1']
    %9 = vsyncpa [#allocation3], 0
    // Predicated region
    $region2: #{tpu_custom_call.1} parent=1 // pred_check
      _
    $region3: #{tpu_custom_call.1} parent=1 // pred_check_branch
      %11 = sbr.rel (0) target = $region5
    $region4: #{tpu_custom_call.1} parent=1 // pred_region
      _
    $region5: #{tpu_custom_call.1} parent=1 // pred_fallthru
      _
    // Predicated region
    $region6: #{tpu_custom_call.1} parent=1 // pred_check
      _
    $region7: #{tpu_custom_call.1} parent=1 // pred_check_branch
      %13 = sbr.rel (0) target = $region9
    $region8: #{tpu_custom_call.1} parent=1 // pred_region
      _
    $region9: #{tpu_custom_call.1} parent=1 // pred_fallthru
      _
    // Predicated region
    $region10: #{tpu_custom_call.1} parent=1 // pred_check
      _
    $region11: #{tpu_custom_call.1} parent=1 // pred_check_branch
      %15 = sbr.rel (0) target = $region13
    $region12: #{tpu_custom_call.1} parent=1 // pred_region
      %s17 = ssub.s32 16, 16
      %18 = vsyncadd [#allocation3], %s17
      %s20 = sshll.u32 %s2, 4
      %s21 = int_to_ptr.vmem [resolvable:$true] %s20
      %23 = dma.vmem_to_smem %s21, 16, [#allocation2], [#allocation3]
    $region13: #{tpu_custom_call.1} parent=1 // pred_fallthru
      _
    // Predicated region
    $region14: #{tpu_custom_call.1} parent=1 // pred_check
      _
    $region15: #{tpu_custom_call.1} parent=1 // pred_check_branch
      %25 = sbr.rel (0) target = $region17
    $region16: #{tpu_custom_call.1} parent=1 // pred_region
      _
    $region17: #{tpu_custom_call.1} parent=1 // pred_fallthru
      _
    // Predicated region
    $region18: #{tpu_custom_call.1} parent=1 // pred_check
      _
    $region19: #{tpu_custom_call.1} parent=1 // pred_check_branch
      %27 = sbr.rel (0) target = $region21
    $region20: #{tpu_custom_call.1} parent=1 // pred_region
      %28 = dma.done [#allocation3], 16
    $region21: #{tpu_custom_call.1} parent=1 // pred_fallthru
      _
    %29 = sfence
    %v30 = vld [vmem:[%s0] sm:$0xff]
    %v31 = vld [vmem:[%s1] sm:$0xff]
    %v32 = vld [vmem:[%s1 + $0x8] sm:$0xff]
    %v33 = vld [vmem:[%s1 + $0x10] sm:$0xff]
    %v34 = vld [vmem:[%s1 + $0x18] sm:$0xff]
    %vm35 = vcmask 261120
    %v37 = vsel %vm35, %v30, 0
    %39 = vmatprep.subr.mxu0 0.0
    %40 = vmatpush1.msra.mxu0 0.0
    %41 = vmatprep.subr.mxu0 0.0
    %42 = vmatpush1.msra.mxu0 0.0
    %43 = vmatprep.subr.mxu0 0.0
    %44 = vmatpush1.msra.mxu0 0.0
    %45 = vmatprep.subr.mxu0 0.0
    %46 = vmatpush1.msra.mxu0 0.0
    %47 = vmatprep.subr.mxu0 0.0
    %48 = vmatpush1.msra.mxu0 0.0
    %49 = vmatprep.subr.mxu0 0.0
    %50 = vmatpush1.msra.mxu0 0.0
    %51 = vmatprep.subr.mxu0 0.0
    %52 = vmatpush1.msra.mxu0 0.0
    %53 = vmatprep.subr.mxu0 0.0
    %54 = vmatpush1.msra.mxu0 0.0
    %55 = vmatprep.subr.mxu0 0.0
    %56 = vmatpush1.msra.mxu0 0.0
    %57 = vmatprep.subr.mxu0 0.0
    %58 = vmatpush1.msra.mxu0 0.0
    %59 = vmatprep.subr.mxu0 0.0
    %60 = vmatpush1.msra.mxu0 0.0
    %61 = vmatprep.subr.mxu0 0.0
    %62 = vmatpush1.msra.mxu0 0.0
    %63 = vmatprep.subr.mxu0 0.0
    %64 = vmatpush1.msra.mxu0 %v34
    %65 = vmatprep.subr.mxu0 0.0
    %66 = vmatpush1.msra.mxu0 %v33
    %67 = vmatprep.subr.mxu0 0.0
    %68 = vmatpush1.msra.mxu0 %v32
    %69 = vmatprep.subr.mxu0 0.0
    %70 = vmatpush1.msra.mxu0 %v31
    %71 = vmatprep.subr.mxu0 0.0
    %72 = vmatpush2.msra.mxu0 0.0
    %73 = vmatprep.subr.mxu0 0.0
    %74 = vmatpush2.msra.mxu0 0.0
    %75 = vmatprep.subr.mxu0 0.0
    %76 = vmatpush2.msra.mxu0 0.0
    %77 = vmatprep.subr.mxu0 0.0
    %78 = vmatpush2.msra.mxu0 0.0
    %79 = vmatprep.subr.mxu0 0.0
    %80 = vmatpush2.msra.mxu0 0.0
    %81 = vmatprep.subr.mxu0 0.0
    %82 = vmatpush2.msra.mxu0 0.0
    %83 = vmatprep.subr.mxu0 0.0
    %84 = vmatpush2.msra.mxu0 0.0
    %85 = vmatprep.subr.mxu0 0.0
    %86 = vmatpush2.msra.mxu0 0.0
    %87 = vmatprep.subr.mxu0 0.0
    %88 = vmatpush2.msra.mxu0 0.0
    %89 = vmatprep.subr.mxu0 0.0
    %90 = vmatpush2.msra.mxu0 0.0
    %91 = vmatprep.subr.mxu0 0.0
    %92 = vmatpush2.msra.mxu0 0.0
    %93 = vmatprep.subr.mxu0 0.0
    %94 = vmatpush2.msra.mxu0 0.0
    %95 = vmatprep.subr.mxu0 0.0
    %96 = vmatpush2.msra.mxu0 0.0
    %97 = vmatprep.subr.mxu0 0.0
    %98 = vmatpush2.msra.mxu0 0.0
    %99 = vmatprep.subr.mxu0 0.0
    %100 = vmatpush2.msra.mxu0 0.0
    %101 = vmatprep.subr.mxu0 0.0
    %102 = vmatpush2.msra.mxu0 0.0
    %103 = vmatprep.mubr.f32.mxu0 0.0
    %104 = vmatmul.mubr.f32.gmra.mxu0 %v37
    %v105 = vpop.f32.mrf.mxu0
    %v106 = vadd.f32 0.0, %v105
    %v107 = vpop.f32.mrf.mxu0
    %108 = vdwg.mxu0
    %s109 = sld [smem:[#allocation2]]
    %v110 = vstv %s109
    %v111 = vadd.f32 %v106, %v110
    %s112 = sld [smem:[#allocation2 + $0x1]]
    %v113 = vstv %s112
    %v114 = vadd.f32 %v106, %v113
    %v115 = vmax.f32 %v114, 0.0
    %v116 = vand.u32 2147483647, %v114
    %v117 = vsub.f32 0.0, %v116
    %v118 = vmul.f32 %v117, 1.442695
    %v119 = vpow.pop %v118
    %v120 = vadd.f32 %v119, 1.0
    %v121 = vlog2.pop %v120
    %v122 = vmul.f32 %v121, 0.6931472
    %v123 = vmul.f32 -0.5, %v119
    %v124 = vadd.f32 %v123, 1.0
    %v125 = vmul.f32 %v124, %v119
    %v126 = vand.u32 2147483647, %v119
    %vm127 = vcmp.lt.f32.partialorder %v126, 0.0004427343
    %v128 = vsel %vm127, %v125, %v122
    %v129 = vadd.f32 %v115, %v128
    %v130 = vld [vmem:[%s3] sm:$0xff]
    %132 = vrot.lane.b32.xlu0 %v130, 1
    %v133 = vpop.permute.xlu0 %132
    %v135 = vmul.f32 %v129, %v133
    %137 = vrot.lane.b32.xlu0 %v135, 127
    %v138 = vpop.permute.xlu0 %137
    %v140 = vadd.f32 %v111, %v138
    %v141 = vlaneseq
    %v142 = vand.u32 %v141, 127
    %vm143 = vcmp.eq.s32.totalorder %v142, 0
    %145 = vset.pattern.permute.xlu0 0
    %146 = vperm.xlu0 %145, %v140
    %v147 = vpop.permute.xlu0 %146
    %150 = vset.pattern.permute.xlu0 1
    %151 = vperm.xlu0 %150, %v129
    %v152 = vpop.permute.xlu0 %151
    %v154 = vsel %vm143, %v147, %v152
    %vm155 = vcmask 15360
    %156 = vst.msk [vmem:[%s4] sm:$0xff] %vm155, %v154
    // Predicated region
    $region22: #{tpu_custom_call.1} parent=1 // pred_check
      _
    $region23: #{tpu_custom_call.1} parent=1 // pred_check_branch
      %158 = sbr.rel (0) target = $region25
    $region24: #{tpu_custom_call.1} parent=1 // pred_region
      _
    $region25: #{tpu_custom_call.1} parent=1 // pred_fallthru
      _
    // Predicated region
    $region26: #{tpu_custom_call.1} parent=1 // pred_check
      _
    $region27: #{tpu_custom_call.1} parent=1 // pred_check_branch
      %160 = sbr.rel (0) target = $region29
    $region28: #{tpu_custom_call.1} parent=1 // pred_region
      _
    $region29: #{tpu_custom_call.1} parent=1 // pred_fallthru
      _
    %161 = vsyncpa [#allocation3], 1

</llo_original>
